<compile_context>
chip_gen: v5e
topology: v5e:2x2
jax: 0.10.0
libtpu: 0.0.40
codegen_flags: <defaults>
</compile_context>

<pallas_src>
import math

import jax
import jax.numpy as jnp
from jax.experimental import pallas as pl
from jax.experimental.pallas import tpu as pltpu

_INV_SQRT2 = 0.7071067811865476


def _round_up(x: int, m: int) -> int:
    return (x + m - 1) // m * m


def _erf(x):
    # Abramowitz & Stegun 7.1.26 polynomial, |abs error| < 1.5e-7.
    ax = jnp.abs(x)
    t = 1.0 / (1.0 + 0.3275911 * ax)
    poly = t * (0.254829592
                + t * (-0.284496736
                       + t * (1.421413741
                              + t * (-1.453152027 + t * 1.061405429))))
    y = 1.0 - poly * jnp.exp(-ax * ax)
    return jnp.where(x < 0, -y, y)


def _gelu_erf(x):
    # Exact (erf-form) GeLU, matching torch: 0.5 * x * (1 + erf(x / sqrt(2))).
    return 0.5 * x * (1.0 + _erf(x * _INV_SQRT2))


def prediction_kernel(a_ref, b_ref, w1a_ref, w1b_ref, b1_ref, w2_ref, b2_ref, o_ref):
    # h = concat([a, b], -1) @ W1 + b1  ==  a @ W1[:H] + b @ W1[H:] + b1
    h = jnp.dot(a_ref[...], w1a_ref[...], preferred_element_type=jnp.float32)
    h = h + jnp.dot(b_ref[...], w1b_ref[...], preferred_element_type=jnp.float32)
    h = h + b1_ref[...]

    h = _gelu_erf(h)                      # VPU/EUP work; not the binding unit.

    # Linear2 into the compact (tb, C) output block.
    o = jnp.dot(h.astype(w2_ref.dtype), w2_ref[...],
                preferred_element_type=jnp.float32)
    o_ref[...] = (o + b2_ref[...]).astype(o_ref.dtype)


def prepare_prediction_params(w1, b1, w2, b2):
    """One-time parameter preprocessing (hoisted out of the per-call hot path).

    w1: [2H, H'];  b1: [H'] or [1, H'];  w2: [H', C];  b2: [C] or [1, C].
    """
    two_h, hh = w1.shape
    assert two_h % 2 == 0
    h = two_h // 2
    c = w2.shape[1]
    # Split the first-layer weight so the kernel never concatenates along lanes.
    # Ordering: w1[:H] pairs with `a`, w1[H:] with `b` (== torch.cat([a, b], -1)).
    w1a = w1[:h, :]
    w1b = w1[h:, :]
    b1 = jnp.reshape(b1, (1, hh))
    b2 = jnp.reshape(b2, (1, c))
    return w1a, w1b, b1, w2, b2


def prediction_forward(a, b, params, *, tile_b=8192):
    """a, b: [B, H] float32; params: output of prepare_prediction_params."""
    w1a, w1b, b1, w2, b2 = params
    B, H = a.shape
    assert b.shape == (B, H)
    assert w1a.shape == (H, w1a.shape[1]) and w1b.shape == w1a.shape
    Hh = w1a.shape[1]
    C = w2.shape[1]

    # Batch tile: multiple of 8 (sublane), big enough to amortize the
    # ~0.35 us per-grid-step pipeline overhead, but capped at ceil(B/2) so the
    # "parallel" batch axis still has >= 2 steps for v7x's two TensorCores.
    # At tb=8192 (f32, H=Hh=32, C=4) the double-buffered working set is
    # ~4.5 MiB -- far under the 32 MiB scoped-VMEM limit on every generation.
    tb = max(8, _round_up(min(tile_b, pl.cdiv(B, 2)), 8))
    grid = (pl.cdiv(B, tb),)   # ragged tail tile handled by Pallas block masking

    batch_spec = pl.BlockSpec((tb, H), lambda i: (i, 0))
    # Weights/biases: constant index_map -> VMEM-resident across grid steps.
    # (pipeline_mode=pl.Buffered(1) would drop the dead second buffer, but the
    #  saving is negligible at Hh=32 / C=4.)
    w1_spec = pl.BlockSpec((H, Hh), lambda i: (0, 0))
    b1_spec = pl.BlockSpec((1, Hh), lambda i: (0, 0))
    w2_spec = pl.BlockSpec((Hh, C), lambda i: (0, 0))
    b2_spec = pl.BlockSpec((1, C), lambda i: (0, 0))
    out_spec = pl.BlockSpec((tb, C), lambda i: (i, 0))   # compact: no C padding

    flops = 2 * B * (2 * H * Hh + Hh * C)
    bytes_accessed = 4 * (B * (2 * H + C) + 2 * H * Hh + Hh * C + Hh + C)
    cost = pl.CostEstimate(flops=flops,
                           transcendentals=B * Hh,
                           bytes_accessed=bytes_accessed)

    return pl.pallas_call(
        prediction_kernel,
        out_shape=jax.ShapeDtypeStruct((B, C), jnp.float32),
        grid=grid,
        in_specs=[batch_spec, batch_spec, w1_spec, w1_spec, b1_spec, w2_spec, b2_spec],
        out_specs=out_spec,
        compiler_params=pltpu.CompilerParams(
            dimension_semantics=("parallel",),
            vmem_limit_bytes=32 * 1024 * 1024,
        ),
        cost_estimate=cost,
    )(a, b, w1a, w1b, b1, w2, b2)


def _reference(a, b, w1, b1, w2, b2):
    x = jnp.concatenate([a, b], axis=-1)
    h = x @ w1 + jnp.reshape(b1, (1, -1))
    h = jax.nn.gelu(h, approximate=False)   # exact erf GeLU (torch-style)
    return h @ w2 + jnp.reshape(b2, (1, -1))


if __name__ == "__main__":
    # Small shapes consistent with the module: hidden_size=32, input_features=2,
    # num_classes=4, batch=20 (exercises a partial tail tile: tb=16, grid=2).
    batch, hidden, num_classes = 20, 32, 4
    in_features = hidden * 2

    key = jax.random.PRNGKey(0)
    k_a, k_b, k_w1, k_w2 = jax.random.split(key, 4)

    a = jax.random.normal(k_a, (batch, hidden), dtype=jnp.float32)
    b = jax.random.normal(k_b, (batch, hidden), dtype=jnp.float32)

    # Deterministic init mirroring RE2's Linear: normal(std=sqrt(2/in)) for the
    # GeLU-activated layer, sqrt(1/in) for the output layer; zero biases.
    w1 = jax.random.normal(k_w1, (in_features, hidden), dtype=jnp.float32) * math.sqrt(2.0 / in_features)
    b1 = jnp.zeros((hidden,), dtype=jnp.float32)
    w2 = jax.random.normal(k_w2, (hidden, num_classes), dtype=jnp.float32) * math.sqrt(1.0 / hidden)
    b2 = jnp.zeros((num_classes,), dtype=jnp.float32)

    # TODO(synk): training-mode Dropout (stochastic masking) not implemented;
    # forward matches PyTorch eval() semantics where Dropout is identity.

    params = prepare_prediction_params(w1, b1, w2, b2)
    out = prediction_forward(a, b, params)
    out = jax.block_until_ready(out)

    ref = _reference(a, b, w1, b1, w2, b2)
    assert out.shape == (batch, num_classes), out.shape
    assert jnp.allclose(out, ref, atol=1e-4, rtol=1e-4), "mismatch vs reference"

    print("KERNEL_OK")
</pallas_src>

<mosaic_0001>
module attributes {stable_mosaic.version = 11 : i64} {
  func.func @prediction_kernel(%arg0: i32, %arg1: memref<16x32xf32, #tpu.memory_space<vmem>>, %arg2: memref<16x32xf32, #tpu.memory_space<vmem>>, %arg3: memref<32x32xf32, #tpu.memory_space<vmem>>, %arg4: memref<32x32xf32, #tpu.memory_space<vmem>>, %arg5: memref<1x32xf32, #tpu.memory_space<vmem>>, %arg6: memref<32x4xf32, #tpu.memory_space<vmem>>, %arg7: memref<1x4xf32, #tpu.memory_space<vmem>>, %arg8: memref<16x4xf32, #tpu.memory_space<vmem>>) attributes {dimension_semantics = [#tpu.dimension_semantics<parallel>], iteration_bounds = array<i64: 2>, scalar_prefetch = 0 : i64, scratch_operands = 0 : i64, tpu.core_type = #tpu.core_type<tc>, window_params = [{transform_indices = @transform_0, window_bounds = array<i64: 16, 32>}, {transform_indices = @transform_1, window_bounds = array<i64: 16, 32>}, {pipeline_mode = #tpu.pipeline_mode<synchronous>, transform_indices = @transform_2, window_bounds = array<i64: 32, 32>}, {pipeline_mode = #tpu.pipeline_mode<synchronous>, transform_indices = @transform_3, window_bounds = array<i64: 32, 32>}, {pipeline_mode = #tpu.pipeline_mode<synchronous>, transform_indices = @transform_4, window_bounds = array<i64: 1, 32>}, {pipeline_mode = #tpu.pipeline_mode<synchronous>, transform_indices = @transform_5, window_bounds = array<i64: 32, 4>}, {pipeline_mode = #tpu.pipeline_mode<synchronous>, transform_indices = @transform_6, window_bounds = array<i64: 1, 4>}, {transform_indices = @transform_7, window_bounds = array<i64: 16, 4>}]} {
    %c0 = arith.constant 0 : index
    %c0_0 = arith.constant 0 : index
    %0 = vector.load %arg1[%c0, %c0_0] : memref<16x32xf32, #tpu.memory_space<vmem>>, vector<16x32xf32>
    %c0_1 = arith.constant 0 : index
    %c0_2 = arith.constant 0 : index
    %1 = vector.load %arg3[%c0_1, %c0_2] : memref<32x32xf32, #tpu.memory_space<vmem>>, vector<32x32xf32>
    %cst = arith.constant dense<0.000000e+00> : vector<16x32xf32>
    %2 = tpu.matmul %0, %1, %cst {dimension_numbers = #tpu.dot_dimension_numbers<[1], [0], [0], [1], [0, 0, 1, 1], [], []>} : vector<16x32xf32>, vector<32x32xf32>, vector<16x32xf32> -> vector<16x32xf32>
    %c0_3 = arith.constant 0 : index
    %c0_4 = arith.constant 0 : index
    %3 = vector.load %arg2[%c0_3, %c0_4] : memref<16x32xf32, #tpu.memory_space<vmem>>, vector<16x32xf32>
    %c0_5 = arith.constant 0 : index
    %c0_6 = arith.constant 0 : index
    %4 = vector.load %arg4[%c0_5, %c0_6] : memref<32x32xf32, #tpu.memory_space<vmem>>, vector<32x32xf32>
    %cst_7 = arith.constant dense<0.000000e+00> : vector<16x32xf32>
    %5 = tpu.matmul %3, %4, %cst_7 {dimension_numbers = #tpu.dot_dimension_numbers<[1], [0], [0], [1], [0, 0, 1, 1], [], []>} : vector<16x32xf32>, vector<32x32xf32>, vector<16x32xf32> -> vector<16x32xf32>
    %6 = arith.addf %2, %5 : vector<16x32xf32>
    %c0_8 = arith.constant 0 : index
    %c0_9 = arith.constant 0 : index
    %7 = vector.load %arg5[%c0_8, %c0_9] : memref<1x32xf32, #tpu.memory_space<vmem>>, vector<1x32xf32>
    %8 = vector.broadcast %7 : vector<1x32xf32> to vector<16x32xf32>
    %9 = arith.addf %6, %8 : vector<16x32xf32>
    %cst_10 = arith.constant 5.000000e-01 : f32
    %10 = vector.broadcast %cst_10 : f32 to vector<16x32xf32>
    %11 = arith.mulf %10, %9 : vector<16x32xf32>
    %cst_11 = arith.constant 0.707106769 : f32
    %12 = vector.broadcast %cst_11 : f32 to vector<16x32xf32>
    %13 = arith.mulf %9, %12 : vector<16x32xf32>
    %14 = math.absf %13 : vector<16x32xf32>
    %cst_12 = arith.constant 0.327591091 : f32
    %15 = vector.broadcast %cst_12 : f32 to vector<16x32xf32>
    %16 = arith.mulf %15, %14 : vector<16x32xf32>
    %cst_13 = arith.constant 1.000000e+00 : f32
    %17 = vector.broadcast %cst_13 : f32 to vector<16x32xf32>
    %18 = arith.addf %17, %16 : vector<16x32xf32>
    %cst_14 = arith.constant 1.000000e+00 : f32
    %19 = vector.broadcast %cst_14 : f32 to vector<16x32xf32>
    %20 = arith.divf %19, %18 : vector<16x32xf32>
    %cst_15 = arith.constant 1.06140542 : f32
    %21 = vector.broadcast %cst_15 : f32 to vector<16x32xf32>
    %22 = arith.mulf %20, %21 : vector<16x32xf32>
    %cst_16 = arith.constant -1.45315206 : f32
    %23 = vector.broadcast %cst_16 : f32 to vector<16x32xf32>
    %24 = arith.addf %23, %22 : vector<16x32xf32>
    %25 = arith.mulf %20, %24 : vector<16x32xf32>
    %cst_17 = arith.constant 1.42141378 : f32
    %26 = vector.broadcast %cst_17 : f32 to vector<16x32xf32>
    %27 = arith.addf %26, %25 : vector<16x32xf32>
    %28 = arith.mulf %20, %27 : vector<16x32xf32>
    %cst_18 = arith.constant -0.284496725 : f32
    %29 = vector.broadcast %cst_18 : f32 to vector<16x32xf32>
    %30 = arith.addf %29, %28 : vector<16x32xf32>
    %31 = arith.mulf %20, %30 : vector<16x32xf32>
    %cst_19 = arith.constant 0.254829586 : f32
    %32 = vector.broadcast %cst_19 : f32 to vector<16x32xf32>
    %33 = arith.addf %32, %31 : vector<16x32xf32>
    %34 = arith.mulf %20, %33 : vector<16x32xf32>
    %cst_20 = arith.constant 0.000000e+00 : f32
    %35 = vector.broadcast %cst_20 : f32 to vector<16x32xf32>
    %36 = arith.subf %35, %14 : vector<16x32xf32>
    %37 = arith.mulf %36, %14 : vector<16x32xf32>
    %38 = math.exp %37 : vector<16x32xf32>
    %39 = arith.mulf %34, %38 : vector<16x32xf32>
    %cst_21 = arith.constant 1.000000e+00 : f32
    %40 = vector.broadcast %cst_21 : f32 to vector<16x32xf32>
    %41 = arith.subf %40, %39 : vector<16x32xf32>
    %cst_22 = arith.constant 0.000000e+00 : f32
    %42 = vector.broadcast %cst_22 : f32 to vector<16x32xf32>
    %43 = arith.cmpf olt, %13, %42 : vector<16x32xf32>
    %cst_23 = arith.constant 0.000000e+00 : f32
    %44 = vector.broadcast %cst_23 : f32 to vector<16x32xf32>
    %45 = arith.subf %44, %41 : vector<16x32xf32>
    %46 = arith.select %43, %45, %41 : vector<16x32xi1>, vector<16x32xf32>
    %cst_24 = arith.constant 1.000000e+00 : f32
    %47 = vector.broadcast %cst_24 : f32 to vector<16x32xf32>
    %48 = arith.addf %47, %46 : vector<16x32xf32>
    %49 = arith.mulf %11, %48 : vector<16x32xf32>
    %c0_25 = arith.constant 0 : index
    %c0_26 = arith.constant 0 : index
    %50 = vector.load %arg6[%c0_25, %c0_26] : memref<32x4xf32, #tpu.memory_space<vmem>>, vector<32x4xf32>
    %cst_27 = arith.constant dense<0.000000e+00> : vector<16x4xf32>
    %51 = tpu.matmul %49, %50, %cst_27 {dimension_numbers = #tpu.dot_dimension_numbers<[1], [0], [0], [1], [0, 0, 1, 1], [], []>} : vector<16x32xf32>, vector<32x4xf32>, vector<16x4xf32> -> vector<16x4xf32>
    %c0_28 = arith.constant 0 : index
    %c0_29 = arith.constant 0 : index
    %52 = vector.load %arg7[%c0_28, %c0_29] : memref<1x4xf32, #tpu.memory_space<vmem>>, vector<1x4xf32>
    %53 = vector.broadcast %52 : vector<1x4xf32> to vector<16x4xf32>
    %54 = arith.addf %51, %53 : vector<16x4xf32>
    %c0_30 = arith.constant 0 : index
    %c0_31 = arith.constant 0 : index
    %55 = vector.load %arg8[%c0_30, %c0_31] : memref<16x4xf32, #tpu.memory_space<vmem>>, vector<16x4xf32>
    tpu.vector_store %arg8[%c0_30, %c0_31], %54 {strides = array<i32>} : memref<16x4xf32, #tpu.memory_space<vmem>>, vector<16x4xf32>,
    return
  }
  func.func @transform_0(%arg0: i32) -> (i32, i32) {
    %c0_i32 = arith.constant 0 : i32
    %c0_i32_0 = arith.constant 0 : i32
    return %arg0, %c0_i32 : i32, i32
  }
  func.func @transform_1(%arg0: i32) -> (i32, i32) {
    %c0_i32 = arith.constant 0 : i32
    %c0_i32_0 = arith.constant 0 : i32
    return %arg0, %c0_i32 : i32, i32
  }
  func.func @transform_2(%arg0: i32) -> (i32, i32) {
    %c0_i32 = arith.constant 0 : i32
    %c0_i32_0 = arith.constant 0 : i32
    %c0_i32_1 = arith.constant 0 : i32
    return %c0_i32, %c0_i32_0 : i32, i32
  }
  func.func @transform_3(%arg0: i32) -> (i32, i32) {
    %c0_i32 = arith.constant 0 : i32
    %c0_i32_0 = arith.constant 0 : i32
    %c0_i32_1 = arith.constant 0 : i32
    return %c0_i32, %c0_i32_0 : i32, i32
  }
  func.func @transform_4(%arg0: i32) -> (i32, i32) {
    %c0_i32 = arith.constant 0 : i32
    %c0_i32_0 = arith.constant 0 : i32
    %c0_i32_1 = arith.constant 0 : i32
    return %c0_i32, %c0_i32_0 : i32, i32
  }
  func.func @transform_5(%arg0: i32) -> (i32, i32) {
    %c0_i32 = arith.constant 0 : i32
    %c0_i32_0 = arith.constant 0 : i32
    %c0_i32_1 = arith.constant 0 : i32
    return %c0_i32, %c0_i32_0 : i32, i32
  }
  func.func @transform_6(%arg0: i32) -> (i32, i32) {
    %c0_i32 = arith.constant 0 : i32
    %c0_i32_0 = arith.constant 0 : i32
    %c0_i32_1 = arith.constant 0 : i32
    return %c0_i32, %c0_i32_0 : i32, i32
  }
  func.func @transform_7(%arg0: i32) -> (i32, i32) {
    %c0_i32 = arith.constant 0 : i32
    %c0_i32_0 = arith.constant 0 : i32
    return %arg0, %c0_i32 : i32, i32
  }
}

</mosaic_0001>

<llo_original>
// kernel: tpu_custom_call.1
$region0: #{tpu_custom_call.1}
  #allocation0 [shape = 'u32[]', space=smem, size = 0x4, offset = 0x4, fixed_abs, tag = 'smem constant byte address 0x4 - core index']
  #allocation1 [shape = 'u32[72,128]{1,0:T(1,128)}', space=vmem, size = 0x9000, scoped, tag = 'internal scratch']
  %s0 = inlined_call_operand.hbm [shape: f32[20,32], index: 0, kind: input, shape index: {}]
  %s1 = inlined_call_operand.hbm [shape: f32[20,32], index: 1, kind: input, shape index: {}]
  %s2 = inlined_call_operand.vmem [shape: f32[32,32], index: 2, kind: input, shape index: {}]
  %s3 = inlined_call_operand.hbm [shape: f32[32,32], index: 3, kind: input, shape index: {}]
  %s4 = inlined_call_operand.vmem [shape: f32[1,32], index: 4, kind: input, shape index: {}]
  %s5 = inlined_call_operand.vmem [shape: f32[32,4], index: 5, kind: input, shape index: {}]
  %s6 = inlined_call_operand.vmem [shape: f32[1,4], index: 6, kind: input, shape index: {}]
  %s7 = inlined_call_operand.vmem [shape: f32[20,4], index: 7, kind: output, shape index: {}]
  %s8 = sld [smem:[#allocation0]]
  $region121: #{tpu_custom_call.1} parent=0
    _
  %s10 = ssub.s32 1, %s8
  %s11 = scalar_select 0, %s10, %s8
  $region1: #{tpu_custom_call.1} parent=0
    #allocation2 [shape = 'u8[16384]{0}', space=vmem, size = 0x4000, scoped, tag = 'input window, operand 0']
    #allocation3 [shape = 's32[2]{0}', space=sflag, size = 0x8, scoped, tag = 'scoped memory for tpu_custom_call.1']
    #allocation4 [shape = 'u8[16384]{0}', space=vmem, size = 0x4000, scoped, tag = 'input window, operand 1']
    #allocation5 [shape = 's32[2]{0}', space=sflag, size = 0x8, scoped, tag = 'scoped memory for tpu_custom_call.1']
    #allocation6 [shape = 'u8[16384]{0}', space=vmem, size = 0x4000, scoped, tag = 'input window, operand 3, single buffered']
    #allocation7 [shape = 'u8[16384]{0}', space=vmem, size = 0x4000, scoped, tag = 'output window, operand 0']
    %12 = vsyncpa [#allocation3], 0
    %s13 = scalar_lea.sflag [#allocation3], 1
    %14 = vsyncpa %s13, 0
    %15 = vsyncpa [#allocation5], 0
    %s16 = scalar_lea.sflag [#allocation5], 1
    %17 = vsyncpa %s16, 0
    loop: start=0, step=1, limit=4
    $region2: #{tpu_custom_call.1} parent=1 // loop_pre_header
      _
    $region3: #{tpu_custom_call.1} parent=1 // loop_header
      %s19 = sphi 0, %s23
      %p20 = scmp.ge.s32.totalorder %s19, 4
      %s29 = sphi 0, %s31
      %s32 = sphi 0, %s29
      %s33 = sphi 0, %s32
      %s49 = sphi 0, %s33
      %s55 = sphi 0, %s57
      %s58 = sphi 0, %s55
      %s59 = sphi 0, %s58
      %s75 = sphi 0, %s59
      %s79 = sphi 0, %s79
      %s81 = sphi 0, %s79
      %s82 = sphi 0, %s81
      %s96 = sphi 0, %s82
      %s100 = sphi 0, %s100
      %s102 = sphi 0, %s100
      %s103 = sphi 0, %s102
      %s117 = sphi 0, %s103
      %s121 = sphi 0, %s121
      %s123 = sphi 0, %s121
      %s124 = sphi 0, %s123
      %s138 = sphi 0, %s124
      %s142 = sphi 0, %s142
      %s144 = sphi 0, %s142
      %s145 = sphi 0, %s144
      %s159 = sphi 0, %s145
      %s163 = sphi 0, %s163
      %s165 = sphi 0, %s163
      %s166 = sphi 0, %s165
      %s180 = sphi 0, %s166
      %s186 = sphi 0, %s188
      %s189 = sphi 0, %s186
      %s190 = sphi 0, %s189
      %s206 = sphi 0, %s190
    $region4: #{tpu_custom_call.1} parent=1 // loop_header_branch
      %22 = sbr.rel (%p20) target = $region8
    $region5: #{tpu_custom_call.1} parent=1 // loop_body
      %s24 = ssub.s32 %s19, 1
      %s25 = ssub.s32 %s19, 2
      %s26 = sadd.s32 %s19, 1
      %s27 = ssub.s32 %s19, %s26
      %p28 = scmp.eq.s32.totalorder %s27, 0
      %s30 = sadd.s32 %s29, 1
      %s31 = scalar_select %p28, %s29, %s30
      %p34 = pneg %p28
      %p35 = scmp.eq.s32.totalorder %s19, 1
      %p36 = por %p34, %p35
      %p37 = scmp.ne.s32.totalorder %s29, %s32
      %p38 = scmp.eq.s32.totalorder %s19, 0
      %p39 = por %p37, %p38
      %p40 = scmp.ne.s32.totalorder %s29, %s32
      %p41 = scmp.eq.s32.totalorder %s24, 1
      %p42 = por %p40, %p41
      %p43 = scmp.ne.s32.totalorder %s32, %s33
      %p44 = scmp.eq.s32.totalorder %s24, 0
      %p45 = por %p43, %p44
      %p46 = scmp.ne.s32.totalorder %s32, %s33
      %p47 = scmp.eq.s32.totalorder %s25, 1
      %p48 = por %p46, %p47
      %p50 = scmp.ne.s32.totalorder %s33, %s49
      %p51 = scmp.eq.s32.totalorder %s25, 0
      %p52 = por %p50, %p51
      %s53 = ssub.s32 %s19, %s26
      %p54 = scmp.eq.s32.totalorder %s53, 0
      %s56 = sadd.s32 %s55, 1
      %s57 = scalar_select %p54, %s55, %s56
      %p60 = pneg %p54
      %p61 = scmp.eq.s32.totalorder %s19, 1
      %p62 = por %p60, %p61
      %p63 = scmp.ne.s32.totalorder %s55, %s58
      %p64 = scmp.eq.s32.totalorder %s19, 0
      %p65 = por %p63, %p64
      %p66 = scmp.ne.s32.totalorder %s55, %s58
      %p67 = scmp.eq.s32.totalorder %s24, 1
      %p68 = por %p66, %p67
      %p69 = scmp.ne.s32.totalorder %s58, %s59
      %p70 = scmp.eq.s32.totalorder %s24, 0
      %p71 = por %p69, %p70
      %p72 = scmp.ne.s32.totalorder %s58, %s59
      %p73 = scmp.eq.s32.totalorder %s25, 1
      %p74 = por %p72, %p73
      %p76 = scmp.ne.s32.totalorder %s59, %s75
      %p77 = scmp.eq.s32.totalorder %s25, 0
      %p78 = por %p76, %p77
      %s80 = sadd.s32 %s79, 1
      %p83 = scmp.eq.s32.totalorder %s19, 1
      %p84 = scmp.ne.s32.totalorder %s79, %s81
      %p85 = scmp.eq.s32.totalorder %s19, 0
      %p86 = por %p84, %p85
      %p87 = scmp.ne.s32.totalorder %s79, %s81
      %p88 = scmp.eq.s32.totalorder %s24, 1
      %p89 = por %p87, %p88
      %p90 = scmp.ne.s32.totalorder %s81, %s82
      %p91 = scmp.eq.s32.totalorder %s24, 0
      %p92 = por %p90, %p91
      %p93 = scmp.ne.s32.totalorder %s81, %s82
      %p94 = scmp.eq.s32.totalorder %s25, 1
      %p95 = por %p93, %p94
      %p97 = scmp.ne.s32.totalorder %s82, %s96
      %p98 = scmp.eq.s32.totalorder %s25, 0
      %p99 = por %p97, %p98
      %s101 = sadd.s32 %s100, 1
      %p104 = scmp.eq.s32.totalorder %s19, 1
      %p105 = scmp.ne.s32.totalorder %s100, %s102
      %p106 = scmp.eq.s32.totalorder %s19, 0
      %p107 = por %p105, %p106
      %p108 = scmp.ne.s32.totalorder %s100, %s102
      %p109 = scmp.eq.s32.totalorder %s24, 1
      %p110 = por %p108, %p109
      %p111 = scmp.ne.s32.totalorder %s102, %s103
      %p112 = scmp.eq.s32.totalorder %s24, 0
      %p113 = por %p111, %p112
      %p114 = scmp.ne.s32.totalorder %s102, %s103
      %p115 = scmp.eq.s32.totalorder %s25, 1
      %p116 = por %p114, %p115
      %p118 = scmp.ne.s32.totalorder %s103, %s117
      %p119 = scmp.eq.s32.totalorder %s25, 0
      %p120 = por %p118, %p119
      %s122 = sadd.s32 %s121, 1
      %p125 = scmp.eq.s32.totalorder %s19, 1
      %p126 = scmp.ne.s32.totalorder %s121, %s123
      %p127 = scmp.eq.s32.totalorder %s19, 0
      %p128 = por %p126, %p127
      %p129 = scmp.ne.s32.totalorder %s121, %s123
      %p130 = scmp.eq.s32.totalorder %s24, 1
      %p131 = por %p129, %p130
      %p132 = scmp.ne.s32.totalorder %s123, %s124
      %p133 = scmp.eq.s32.totalorder %s24, 0
      %p134 = por %p132, %p133
      %p135 = scmp.ne.s32.totalorder %s123, %s124
      %p136 = scmp.eq.s32.totalorder %s25, 1
      %p137 = por %p135, %p136
      %p139 = scmp.ne.s32.totalorder %s124, %s138
      %p140 = scmp.eq.s32.totalorder %s25, 0
      %p141 = por %p139, %p140
      %s143 = sadd.s32 %s142, 1
      %p146 = scmp.eq.s32.totalorder %s19, 1
      %p147 = scmp.ne.s32.totalorder %s142, %s144
      %p148 = scmp.eq.s32.totalorder %s19, 0
      %p149 = por %p147, %p148
      %p150 = scmp.ne.s32.totalorder %s142, %s144
      %p151 = scmp.eq.s32.totalorder %s24, 1
      %p152 = por %p150, %p151
      %p153 = scmp.ne.s32.totalorder %s144, %s145
      %p154 = scmp.eq.s32.totalorder %s24, 0
      %p155 = por %p153, %p154
      %p156 = scmp.ne.s32.totalorder %s144, %s145
      %p157 = scmp.eq.s32.totalorder %s25, 1
      %p158 = por %p156, %p157
      %p160 = scmp.ne.s32.totalorder %s145, %s159
      %p161 = scmp.eq.s32.totalorder %s25, 0
      %p162 = por %p160, %p161
      %s164 = sadd.s32 %s163, 1
      %p167 = scmp.eq.s32.totalorder %s19, 1
      %p168 = scmp.ne.s32.totalorder %s163, %s165
      %p169 = scmp.eq.s32.totalorder %s19, 0
      %p170 = por %p168, %p169
      %p171 = scmp.ne.s32.totalorder %s163, %s165
      %p172 = scmp.eq.s32.totalorder %s24, 1
      %p173 = por %p171, %p172
      %p174 = scmp.ne.s32.totalorder %s165, %s166
      %p175 = scmp.eq.s32.totalorder %s24, 0
      %p176 = por %p174, %p175
      %p177 = scmp.ne.s32.totalorder %s165, %s166
      %p178 = scmp.eq.s32.totalorder %s25, 1
      %p179 = por %p177, %p178
      %p181 = scmp.ne.s32.totalorder %s166, %s180
      %p182 = scmp.eq.s32.totalorder %s25, 0
      %p183 = por %p181, %p182
      %s184 = ssub.s32 %s19, %s26
      %p185 = scmp.eq.s32.totalorder %s184, 0
      %s187 = sadd.s32 %s186, 1
      %s188 = scalar_select %p185, %s186, %s187
      %p191 = pneg %p185
      %p192 = scmp.eq.s32.totalorder %s19, 1
      %p193 = por %p191, %p192
      %p194 = scmp.ne.s32.totalorder %s186, %s189
      %p195 = scmp.eq.s32.totalorder %s19, 0
      %p196 = por %p194, %p195
      %p197 = scmp.ne.s32.totalorder %s186, %s189
      %p198 = scmp.eq.s32.totalorder %s24, 1
      %p199 = por %p197, %p198
      %p200 = scmp.ne.s32.totalorder %s189, %s190
      %p201 = scmp.eq.s32.totalorder %s24, 0
      %p202 = por %p200, %p201
      %p203 = scmp.ne.s32.totalorder %s189, %s190
      %p204 = scmp.eq.s32.totalorder %s25, 1
      %p205 = por %p203, %p204
      %p207 = scmp.ne.s32.totalorder %s190, %s206
      %p208 = scmp.eq.s32.totalorder %s25, 0
      %p209 = por %p207, %p208
      %p210 = scmp.le.s32.totalorder 1, %s19
      %p211 = scmp.lt.s32.totalorder %s19, 3
      %p212 = pnand %p210, %p211
      %p213 = pneg %p212
      // Predicated region
      $region9: #{tpu_custom_call.1} parent=5 // pred_check
        _
      $region10: #{tpu_custom_call.1} parent=5 // pred_check_branch
        %215 = sbr.rel (%p212) target = $region12
      $region11: #{tpu_custom_call.1} parent=5 // pred_region
        %s216 = ssub.s32 %s19, 1
        // Predicated region
        $region13: #{tpu_custom_call.1} parent=11 // pred_check
          %p217 = pneg %p92
        $region14: #{tpu_custom_call.1} parent=11 // pred_check_branch
          %219 = sbr.rel (%p217) target = $region16
        $region15: #{tpu_custom_call.1} parent=11 // pred_region
          _
        $region16: #{tpu_custom_call.1} parent=11 // pred_fallthru
          _
        // Predicated region
        $region17: #{tpu_custom_call.1} parent=11 // pred_check
          %p220 = pneg %p113
        $region18: #{tpu_custom_call.1} parent=11 // pred_check_branch
          %222 = sbr.rel (%p220) target = $region20
        $region19: #{tpu_custom_call.1} parent=11 // pred_region
          %224 = vsyncadd [#allocation5], 0
          %s225 = sshll.u32 %s3, 4
          %s226 = int_to_ptr.hbm [resolvable:$true] %s225
          %s227 = sshll.u32 [#allocation6], 4
          %s228 = int_to_ptr.vmem [resolvable:$true] %s227
          %233 = dma.hbm_to_vmem [thread:$0]  %s226, 512, %s228, [#allocation5], 128, 128, 8
        $region20: #{tpu_custom_call.1} parent=11 // pred_fallthru
          _
        // Predicated region
        $region21: #{tpu_custom_call.1} parent=11 // pred_check
          %p234 = pneg %p134
        $region22: #{tpu_custom_call.1} parent=11 // pred_check_branch
          %236 = sbr.rel (%p234) target = $region24
        $region23: #{tpu_custom_call.1} parent=11 // pred_region
          _
        $region24: #{tpu_custom_call.1} parent=11 // pred_fallthru
          _
        // Predicated region
        $region25: #{tpu_custom_call.1} parent=11 // pred_check
          %p237 = pneg %p155
        $region26: #{tpu_custom_call.1} parent=11 // pred_check_branch
          %239 = sbr.rel (%p237) target = $region28
        $region27: #{tpu_custom_call.1} parent=11 // pred_region
          _
        $region28: #{tpu_custom_call.1} parent=11 // pred_fallthru
          _
        // Predicated region
        $region29: #{tpu_custom_call.1} parent=11 // pred_check
          %p240 = pneg %p176
        $region30: #{tpu_custom_call.1} parent=11 // pred_check_branch
          %242 = sbr.rel (%p240) target = $region32
        $region31: #{tpu_custom_call.1} parent=11 // pred_region
          _
        $region32: #{tpu_custom_call.1} parent=11 // pred_fallthru
          _
      $region12: #{tpu_custom_call.1} parent=5 // pred_fallthru
        _
      %p243 = scmp.lt.s32.totalorder %s19, 2
      // Predicated region
      $region33: #{tpu_custom_call.1} parent=5 // pred_check
        %p244 = pneg %p243
      $region34: #{tpu_custom_call.1} parent=5 // pred_check_branch
        %246 = sbr.rel (%p244) target = $region36
      $region35: #{tpu_custom_call.1} parent=5 // pred_region
        // Predicated region
        $region37: #{tpu_custom_call.1} parent=35 // pred_check
          %p247 = pneg %p39
        $region38: #{tpu_custom_call.1} parent=35 // pred_check_branch
          %249 = sbr.rel (%p247) target = $region40
        $region39: #{tpu_custom_call.1} parent=35 // pred_region
          %s250 = sand.u32 %s29, 1
          %s251 = scalar_lea.sflag [#allocation3], %s250
          %s252 = sand.u32 %s29, 1
          %s253 = smul.addr %s252, 16
          %s254 = scalar_lea.vmem [#allocation2], %s253
          %s255 = smul.u32 2, %s19
          %s256 = ssub.s32 3, %s255
          %p257 = scmp.lt.s32.totalorder %s256, 2
          %s258 = scalar_select %p257, %s256, 2
          %s259 = smul.u32 8, %s258
          %s260 = ssub.s32 16, %s259
          %s261 = sshll.u32 %s260, 4
          %262 = vsyncadd %s251, %s261
          %p263 = scmp.ne.s32.totalorder 0, %s259
          %s264 = smul.addr %s255, 8
          %s265 = scalar_lea.hbm %s0, %s264
          %s266 = smul.u32 8, %s258
          %s267 = sshll.u32 %s265, 4
          %s268 = int_to_ptr.hbm [resolvable:$true] %s267
          %s269 = sshll.u32 %s254, 4
          %s270 = int_to_ptr.vmem [resolvable:$true] %s269
          %s271 = sshll.u32 %s266, 4
          %275 = dma.hbm_to_vmem [thread:$0]  (%p263), %s268, %s271, %s270, %s251, 128, 128, 8
        $region40: #{tpu_custom_call.1} parent=35 // pred_fallthru
          _
        // Predicated region
        $region41: #{tpu_custom_call.1} parent=35 // pred_check
          %p276 = pneg %p65
        $region42: #{tpu_custom_call.1} parent=35 // pred_check_branch
          %278 = sbr.rel (%p276) target = $region44
        $region43: #{tpu_custom_call.1} parent=35 // pred_region
          %s279 = sand.u32 %s19, 1
          %s280 = scalar_lea.sflag [#allocation5], %s279
          %s281 = sand.u32 %s55, 1
          %s282 = smul.addr %s281, 16
          %s283 = scalar_lea.vmem [#allocation4], %s282
          %s284 = smul.u32 2, %s19
          %s285 = ssub.s32 3, %s284
          %p286 = scmp.lt.s32.totalorder %s285, 2
          %s287 = scalar_select %p286, %s285, 2
          %s288 = smul.u32 8, %s287
          %s289 = ssub.s32 16, %s288
          %s290 = sshll.u32 %s289, 4
          %291 = vsyncadd %s280, %s290
          %p292 = scmp.ne.s32.totalorder 0, %s288
          %s293 = smul.addr %s284, 8
          %s294 = scalar_lea.hbm %s1, %s293
          %s295 = smul.u32 8, %s287
          %s296 = sshll.u32 %s294, 4
          %s297 = int_to_ptr.hbm [resolvable:$true] %s296
          %s298 = sshll.u32 %s283, 4
          %s299 = int_to_ptr.vmem [resolvable:$true] %s298
          %s300 = sshll.u32 %s295, 4
          %304 = dma.hbm_to_vmem [thread:$0]  (%p292), %s297, %s300, %s299, %s280, 128, 128, 8
        $region44: #{tpu_custom_call.1} parent=35 // pred_fallthru
          _
      $region36: #{tpu_custom_call.1} parent=5 // pred_fallthru
        _
      %p305 = scmp.le.s32.totalorder 1, %s19
      %p306 = scmp.lt.s32.totalorder %s19, 3
      %p307 = pnand %p305, %p306
      %p308 = pneg %p307
      // Predicated region
      $region45: #{tpu_custom_call.1} parent=5 // pred_check
        _
      $region46: #{tpu_custom_call.1} parent=5 // pred_check_branch
        %310 = sbr.rel (%p307) target = $region48
      $region47: #{tpu_custom_call.1} parent=5 // pred_region
        %s311 = ssub.s32 %s19, 1
        %s312 = sand.u32 %s32, 1
        %s313 = scalar_lea.sflag [#allocation3], %s312
        %s314 = sand.u32 %s32, 1
        %s315 = smul.addr %s314, 16
        %s316 = scalar_lea.vmem [#allocation2], %s315
        // Predicated region
        $region49: #{tpu_custom_call.1} parent=47 // pred_check
          %p317 = pneg %p45
        $region50: #{tpu_custom_call.1} parent=47 // pred_check_branch
          %319 = sbr.rel (%p317) target = $region52
        $region51: #{tpu_custom_call.1} parent=47 // pred_region
          %321 = dma.done %s313, 256
        $region52: #{tpu_custom_call.1} parent=47 // pred_fallthru
          _
        %s322 = sand.u32 %s24, 1
        %s323 = scalar_lea.sflag [#allocation5], %s322
        %s324 = sand.u32 %s58, 1
        %s325 = smul.addr %s324, 16
        %s326 = scalar_lea.vmem [#allocation4], %s325
        // Predicated region
        $region53: #{tpu_custom_call.1} parent=47 // pred_check
          %p327 = pneg %p71
        $region54: #{tpu_custom_call.1} parent=47 // pred_check_branch
          %329 = sbr.rel (%p327) target = $region56
        $region55: #{tpu_custom_call.1} parent=47 // pred_region
          %331 = dma.done %s323, 256
        $region56: #{tpu_custom_call.1} parent=47 // pred_fallthru
          _
        // Predicated region
        $region57: #{tpu_custom_call.1} parent=47 // pred_check
          %p332 = pneg %p113
        $region58: #{tpu_custom_call.1} parent=47 // pred_check_branch
          %334 = sbr.rel (%p332) target = $region60
        $region59: #{tpu_custom_call.1} parent=47 // pred_region
          %336 = dma.done [#allocation5], 512
        $region60: #{tpu_custom_call.1} parent=47 // pred_fallthru
          _
        %s337 = sand.u32 %s32, 1
        %s338 = scalar_lea.sflag [#allocation3], %s337
        %s339 = sand.u32 %s32, 1
        %s340 = smul.addr %s339, 16
        %s341 = scalar_lea.vmem [#allocation2], %s340
        %p342 = pneg %p45
        %p343 = pneg %p42
        %s344 = sand.u32 %s24, 1
        %s345 = scalar_lea.sflag [#allocation5], %s344
        %s346 = sand.u32 %s58, 1
        %s347 = smul.addr %s346, 16
        %s348 = scalar_lea.vmem [#allocation4], %s347
        %p349 = pneg %p71
        %p350 = pneg %p68
        %p351 = pneg %p92
        %p352 = pneg %p89
        %p353 = pneg %p113
        %p354 = pneg %p110
        %p355 = pneg %p134
        %p356 = pneg %p131
        %p357 = pneg %p155
        %p358 = pneg %p152
        %p359 = pneg %p176
        %p360 = pneg %p173
        %p361 = pneg %p202
        %p362 = pneg %p199
        %s363 = sand.u32 %s189, 1
        %s364 = sand.u32 %s189, 1
        %s365 = smul.addr %s364, 16
        %s366 = scalar_lea.vmem [#allocation7], %s365
        %s367 = smul.u32 2, %s24
        %s368 = ssub.s32 3, %s367
        %p369 = scmp.lt.s32.totalorder %s368, 2
        %s370 = scalar_select %p369, %s368, 2
        %s371 = smul.u32 8, %s370
        %s372 = smul.u32 2, %s24
        %s373 = ssub.s32 3, %s372
        %p374 = scmp.lt.s32.totalorder %s373, 2
        %s375 = scalar_select %p374, %s373, 2
        %s376 = smul.u32 8, %s375
        %s377 = smul.u32 2, %s24
        %s378 = ssub.s32 3, %s377
        %p379 = scmp.lt.s32.totalorder %s378, 2
        %s380 = scalar_select %p379, %s378, 2
        %s381 = smul.u32 8, %s380
        %v382 = vld [vmem:[%s316] sm:$0xff]
        %v383 = vld [vmem:[%s316 + $0x8] sm:$0xff]
        %v384 = vld [vmem:[%s2] sm:$0xff]
        %v385 = vld [vmem:[%s2 + $0x8] sm:$0xff]
        %v386 = vld [vmem:[%s2 + $0x10] sm:$0xff]
        %v387 = vld [vmem:[%s2 + $0x18] sm:$0xff]
        %v388 = vld [vmem:[%s326] sm:$0xff]
        %v389 = vld [vmem:[%s326 + $0x8] sm:$0xff]
        %v390 = vld [vmem:[#allocation6] sm:$0xff]
        %v391 = vld [vmem:[#allocation6 + $0x8] sm:$0xff]
        %v392 = vld [vmem:[#allocation6 + $0x10] sm:$0xff]
        %v393 = vld [vmem:[#allocation6 + $0x18] sm:$0xff]
        %vm394 = vcmask 261120
        %v396 = vsel %vm394, %v388, 0
        %v399 = vsel %vm394, %v389, 0
        %401 = vmatpush.msra.mxu0 0.0
        %402 = vmatpush.msra.mxu0 0.0
        %403 = vmatpush.msra.mxu0 0.0
        %404 = vmatpush.msra.mxu0 0.0
        %405 = vmatpush.msra.mxu0 0.0
        %406 = vmatpush.msra.mxu0 0.0
        %407 = vmatpush.msra.mxu0 0.0
        %408 = vmatpush.msra.mxu0 0.0
        %409 = vmatpush.msra.mxu0 0.0
        %410 = vmatpush.msra.mxu0 0.0
        %411 = vmatpush.msra.mxu0 0.0
        %412 = vmatpush.msra.mxu0 0.0
        %413 = vmatpush.msra.mxu0 %v393
        %414 = vmatpush.msra.mxu0 %v392
        %415 = vmatpush.msra.mxu0 %v391
        %416 = vmatpush.msra.mxu0 %v390
        %417 = vmatmul.f32.gmra.mxu0 %v396
        %v418 = vpop.f32.mrf.mxu0
        %v419 = vadd.f32 0.0, %v418
        %420 = vmatmul.f32.gmra.mxu0 %v399
        %v421 = vpop.f32.mrf.mxu0
        %v422 = vadd.f32 0.0, %v421
        %423 = vdwg.mxu0
        %v425 = vsel %vm394, %v382, 0
        %v428 = vsel %vm394, %v383, 0
        %430 = vmatpush.msra.mxu0 0.0
        %431 = vmatpush.msra.mxu0 0.0
        %432 = vmatpush.msra.mxu0 0.0
        %433 = vmatpush.msra.mxu0 0.0
        %434 = vmatpush.msra.mxu0 0.0
        %435 = vmatpush.msra.mxu0 0.0
        %436 = vmatpush.msra.mxu0 0.0
        %437 = vmatpush.msra.mxu0 0.0
        %438 = vmatpush.msra.mxu0 0.0
        %439 = vmatpush.msra.mxu0 0.0
        %440 = vmatpush.msra.mxu0 0.0
        %441 = vmatpush.msra.mxu0 0.0
        %442 = vmatpush.msra.mxu0 %v387
        %443 = vmatpush.msra.mxu0 %v386
        %444 = vmatpush.msra.mxu0 %v385
        %445 = vmatpush.msra.mxu0 %v384
        %446 = vmatmul.f32.gmra.mxu0 %v425
        %v447 = vpop.f32.mrf.mxu0
        %v448 = vadd.f32 %v419, %v447
        %449 = vmatmul.f32.gmra.mxu0 %v428
        %v450 = vpop.f32.mrf.mxu0
        %v451 = vadd.f32 %v422, %v450
        %452 = vdwg.mxu0
        %v453 = vld [vmem:[%s4] sm:$0x1]
        %v455 = vperm.slane %v453, 0
        %v457 = vadd.f32 %v448, %v455
        %v458 = vadd.f32 %v451, %v455
        %v459 = vmul.f32 %v457, 0.5
        %v460 = vmul.f32 %v458, 0.5
        %v461 = vmul.f32 %v457, 0.70710677
        %v462 = vmul.f32 %v458, 0.70710677
        %v463 = vand.u32 2147483647, %v461
        %v464 = vand.u32 2147483647, %v462
        %v465 = vmul.f32 %v463, 0.3275911
        %v466 = vmul.f32 %v464, 0.3275911
        %v467 = vadd.f32 %v465, 1.0
        %v468 = vadd.f32 %v466, 1.0
        %v469 = vrcp.pop %v467
        %v470 = vmul.f32 %v467, %v469
        %v471 = vsub.f32 1.0, %v470
        %v472 = vmul.f32 %v469, %v471
        %v473 = vadd.f32 %v469, %v472
        %vm474 = vweird.f32 %v467
        %vm475 = vweird.f32 %v469
        %vm476 = vmor %vm474, %vm475
        %v477 = vsel %vm476, %v469, %v473
        %v478 = vand.u32 2147483647, %v467
        %vm479 = vcmp.eq.f32.partialorder %v478, 8.507059e+37
        %v480 = vand.u32 %v467, 2147483648
        %v481 = vor.u32 1.1754944e-38, %v480
        %v482 = vsel %vm479, %v481, %v477
        %v483 = vmul.f32 1.0, %v482
        %v484 = vrcp.pop %v468
        %v485 = vmul.f32 %v468, %v484
        %v486 = vsub.f32 1.0, %v485
        %v487 = vmul.f32 %v484, %v486
        %v488 = vadd.f32 %v484, %v487
        %vm489 = vweird.f32 %v468
        %vm490 = vweird.f32 %v484
        %vm491 = vmor %vm489, %vm490
        %v492 = vsel %vm491, %v484, %v488
        %v493 = vand.u32 2147483647, %v468
        %vm494 = vcmp.eq.f32.partialorder %v493, 8.507059e+37
        %v495 = vand.u32 %v468, 2147483648
        %v496 = vor.u32 1.1754944e-38, %v495
        %v497 = vsel %vm494, %v496, %v492
        %v498 = vmul.f32 1.0, %v497
        %v499 = vmul.f32 %v483, 1.0614054
        %v500 = vmul.f32 %v498, 1.0614054
        %v501 = vadd.f32 %v499, -1.4531521
        %v502 = vadd.f32 %v500, -1.4531521
        %v503 = vmul.f32 %v483, %v501
        %v504 = vmul.f32 %v498, %v502
        %v505 = vadd.f32 %v503, 1.4214138
        %v506 = vadd.f32 %v504, 1.4214138
        %v507 = vmul.f32 %v483, %v505
        %v508 = vmul.f32 %v498, %v506
        %v509 = vadd.f32 %v507, -0.28449672
        %v510 = vadd.f32 %v508, -0.28449672
        %v511 = vmul.f32 %v483, %v509
        %v512 = vmul.f32 %v498, %v510
        %v513 = vadd.f32 %v511, 0.2548296
        %v514 = vadd.f32 %v512, 0.2548296
        %v515 = vmul.f32 %v483, %v513
        %v516 = vmul.f32 %v498, %v514
        %v517 = vsub.f32 0.0, %v463
        %v518 = vsub.f32 0.0, %v464
        %v519 = vmul.f32 %v517, %v463
        %v520 = vmul.f32 %v518, %v464
        %v521 = vmul.f32 %v519, 1.442695
        %v522 = vpow.pop %v521
        %v523 = vmul.f32 %v520, 1.442695
        %v524 = vpow.pop %v523
        %v525 = vmul.f32 %v515, %v522
        %v526 = vmul.f32 %v516, %v524
        %v527 = vsub.f32 1.0, %v525
        %v528 = vsub.f32 1.0, %v526
        %vm529 = vcmp.lt.f32.partialorder %v461, 0.0
        %vm530 = vcmp.lt.f32.partialorder %v462, 0.0
        %v531 = vsub.f32 0.0, %v527
        %v532 = vsub.f32 0.0, %v528
        %v533 = vsel %vm529, %v531, %v527
        %v534 = vsel %vm530, %v532, %v528
        %v535 = vadd.f32 %v533, 1.0
        %v536 = vadd.f32 %v534, 1.0
        %v537 = vmul.f32 %v459, %v535
        %v538 = vmul.f32 %v460, %v536
        %v539 = vld [vmem:[%s5] sm:$0xff]
        %v540 = vld [vmem:[%s5 + $0x8] sm:$0xff]
        %v541 = vld [vmem:[%s5 + $0x10] sm:$0xff]
        %v542 = vld [vmem:[%s5 + $0x18] sm:$0xff]
        %v543 = vld [vmem:[%s6] sm:$0x1]
        %v545 = vperm.slane %v543, 0
        %v548 = vsel %vm394, %v537, 0
        %v551 = vsel %vm394, %v538, 0
        %553 = vmatpush.msra.mxu0 0.0
        %554 = vmatpush.msra.mxu0 0.0
        %555 = vmatpush.msra.mxu0 0.0
        %556 = vmatpush.msra.mxu0 0.0
        %557 = vmatpush.msra.mxu0 0.0
        %558 = vmatpush.msra.mxu0 0.0
        %559 = vmatpush.msra.mxu0 0.0
        %560 = vmatpush.msra.mxu0 0.0
        %561 = vmatpush.msra.mxu0 0.0
        %562 = vmatpush.msra.mxu0 0.0
        %563 = vmatpush.msra.mxu0 0.0
        %564 = vmatpush.msra.mxu0 0.0
        %565 = vmatpush.msra.mxu0 %v542
        %566 = vmatpush.msra.mxu0 %v541
        %567 = vmatpush.msra.mxu0 %v540
        %568 = vmatpush.msra.mxu0 %v539
        %569 = vmatmul.f32.gmra.mxu0 %v548
        %v570 = vpop.f32.mrf.mxu0
        %v571 = vadd.f32 %v545, %v570
        %572 = vmatmul.f32.gmra.mxu0 %v551
        %v573 = vpop.f32.mrf.mxu0
        %v574 = vadd.f32 %v545, %v573
        %575 = vdwg.mxu0
        %vm576 = vcmask 31744
        %577 = vst.msk [vmem:[%s366] sm:$0xff] %vm576, %v571
        %578 = vst.msk [vmem:[%s366 + $0x8] sm:$0xff] %vm576, %v574
        %s579 = sand.u32 %s189, 1
        %s580 = sand.u32 %s189, 1
        %s581 = smul.addr %s580, 16
        %s582 = scalar_lea.vmem [#allocation7], %s581
        // Predicated region
        $region61: #{tpu_custom_call.1} parent=47 // pred_check
          %p583 = pneg %p199
        $region62: #{tpu_custom_call.1} parent=47 // pred_check_branch
          %585 = sbr.rel (%p583) target = $region64
        $region63: #{tpu_custom_call.1} parent=47 // pred_region
          %s586 = smul.u32 2, %s24
          %s587 = ssub.s32 3, %s586
          %p588 = scmp.lt.s32.totalorder %s587, 2
          %s589 = scalar_select %p588, %s587, 2
          %s590 = smul.u32 8, %s589
          %p591 = scmp.ne.s32.totalorder 0, %s590
          %s592 = smul.addr %s586, 8
          %s593 = scalar_lea.vmem %s7, %s592
          // Predicated region
          $region65: #{tpu_custom_call.1} parent=63 // pred_check
            %p594 = pneg %p591
          $region66: #{tpu_custom_call.1} parent=63 // pred_check_branch
            %596 = sbr.rel (%p594) target = $region68
          $region67: #{tpu_custom_call.1} parent=63 // pred_region
            // Predicated region
            $region69: #{tpu_custom_call.1} parent=67 // pred_check
              _
            $region70: #{tpu_custom_call.1} parent=67 // pred_check_branch
              %598 = sbr.rel (0) target = $region72
            $region71: #{tpu_custom_call.1} parent=67 // pred_region
              // Predicated region
              $region91: #{tpu_custom_call.1} parent=71 // pred_check
                _
              $region92: #{tpu_custom_call.1} parent=71 // pred_check_branch
                %650 = sbr.rel (0) target = $region94
              $region93: #{tpu_custom_call.1} parent=71 // pred_region
                %s651 = sshrl.u32 %s589, 1
                // While loop
                $region95: #{tpu_custom_call.1} parent=93 // loop_pre_header
                  _
                $region96: #{tpu_custom_call.1} parent=93 // loop_header
                  %s653 = sphi 0, %s655
                  %p654 = scmp.ge.s32.totalorder %s653, %s651
                  %s658 = sphi 0, %s667
                  %s659 = sphi %s582, %s670
                  %s660 = sphi %s593, %s671
                $region97: #{tpu_custom_call.1} parent=93 // loop_header_branch
                  %657 = sbr.rel (%p654) target = $region101
                $region98: #{tpu_custom_call.1} parent=93 // loop_body
                  %v661 = vld [vmem:[%s659] sm:$0xff]
                  %662 = vst [vmem:[%s660] sm:$0xff] %v661
                  %v663 = vld [vmem:[%s659 + $0x8] sm:$0xff]
                  %664 = vst [vmem:[%s660 + $0x8] sm:$0xff] %v663
                  %s665 = sadd.s32 1, %s658
                  %p666 = scmp.ge.s32.totalorder %s665, %s651
                  %s667 = scalar_select %p666, 0, %s665
                  %s668 = smul.u32 %s667, 16
                  %s669 = smul.u32 %s667, 16
                  %s670 = scalar_lea.vmem %s582, %s668 [#allocation7]
                  %s671 = scalar_lea.vmem %s593, %s669
                $region99: #{tpu_custom_call.1} parent=93 // loop_footer
                  %s655 = sadd.s32 %s653, 1
                $region100: #{tpu_custom_call.1} parent=93 // loop_footer_branch
                  %652 = sbr.rel target = $region96
                $region101: #{tpu_custom_call.1} parent=93 // loop_exit
                  _
                %s672 = sshrl.u32 %s589, 1
                %s673 = sand.u32 %s589, 1
                %s674 = smul.u32 %s672, 2
                %s675 = smul.u32 8, %s674
                %s676 = scalar_lea.vmem %s582, %s675 [#allocation7]
                %s677 = smul.u32 8, %s674
                %s678 = scalar_lea.vmem %s593, %s677
                // While loop
                $region102: #{tpu_custom_call.1} parent=93 // loop_pre_header
                  _
                $region103: #{tpu_custom_call.1} parent=93 // loop_header
                  %s680 = sphi 0, %s682
                  %p681 = scmp.ge.s32.totalorder %s680, %s673
                  %s685 = sphi 0, %s692
                  %s686 = sphi %s676, %s695
                  %s687 = sphi %s678, %s696
                $region104: #{tpu_custom_call.1} parent=93 // loop_header_branch
                  %684 = sbr.rel (%p681) target = $region108
                $region105: #{tpu_custom_call.1} parent=93 // loop_body
                  %v688 = vld [vmem:[%s686] sm:$0xff]
                  %689 = vst [vmem:[%s687] sm:$0xff] %v688
                  %s690 = sadd.s32 1, %s685
                  %p691 = scmp.ge.s32.totalorder %s690, %s673
                  %s692 = scalar_select %p691, 0, %s690
                  %s693 = smul.u32 %s692, 8
                  %s694 = smul.u32 %s692, 8
                  %s695 = scalar_lea.vmem %s676, %s693 [#allocation7]
                  %s696 = scalar_lea.vmem %s678, %s694
                $region106: #{tpu_custom_call.1} parent=93 // loop_footer
                  %s682 = sadd.s32 %s680, 1
                $region107: #{tpu_custom_call.1} parent=93 // loop_footer_branch
                  %679 = sbr.rel target = $region103
                $region108: #{tpu_custom_call.1} parent=93 // loop_exit
                  _
              $region94: #{tpu_custom_call.1} parent=71 // pred_fallthru
                _
              // Predicated region
              $region109: #{tpu_custom_call.1} parent=71 // pred_check
                _
              $region110: #{tpu_custom_call.1} parent=71 // pred_check_branch
                %698 = sbr.rel target = $region112
              $region111: #{tpu_custom_call.1} parent=71 // pred_region
                _
              $region112: #{tpu_custom_call.1} parent=71 // pred_fallthru
                _
            $region72: #{tpu_custom_call.1} parent=67 // pred_fallthru
              _
            // Predicated region
            $region73: #{tpu_custom_call.1} parent=67 // pred_check
              _
            $region74: #{tpu_custom_call.1} parent=67 // pred_check_branch
              %600 = sbr.rel target = $region76
            $region75: #{tpu_custom_call.1} parent=67 // pred_region
              %s602 = ssub.s32 256, 1
              %s603 = sshrl.u32 %s589, 1
              // While loop
              $region77: #{tpu_custom_call.1} parent=75 // loop_pre_header
                _
              $region78: #{tpu_custom_call.1} parent=75 // loop_header
                %s605 = sphi 0, %s607
                %p606 = scmp.ge.s32.totalorder %s605, %s603
                %s610 = sphi 0, %s619
                %s611 = sphi %s582, %s622
                %s612 = sphi %s593, %s623
              $region79: #{tpu_custom_call.1} parent=75 // loop_header_branch
                %609 = sbr.rel (%p606) target = $region83
              $region80: #{tpu_custom_call.1} parent=75 // loop_body
                %v613 = vld [vmem:[%s611] sm:%s602]
                %614 = vst [vmem:[%s612] sm:%s602] %v613
                %v615 = vld [vmem:[%s611 + $0x8] sm:%s602]
                %616 = vst [vmem:[%s612 + $0x8] sm:%s602] %v615
                %s617 = sadd.s32 1, %s610
                %p618 = scmp.ge.s32.totalorder %s617, %s603
                %s619 = scalar_select %p618, 0, %s617
                %s620 = smul.u32 %s619, 16
                %s621 = smul.u32 %s619, 16
                %s622 = scalar_lea.vmem %s582, %s620 [#allocation7]
                %s623 = scalar_lea.vmem %s593, %s621
              $region81: #{tpu_custom_call.1} parent=75 // loop_footer
                %s607 = sadd.s32 %s605, 1
              $region82: #{tpu_custom_call.1} parent=75 // loop_footer_branch
                %604 = sbr.rel target = $region78
              $region83: #{tpu_custom_call.1} parent=75 // loop_exit
                _
              %s624 = sshrl.u32 %s589, 1
              %s625 = sand.u32 %s589, 1
              %s626 = smul.u32 %s624, 2
              %s627 = smul.u32 8, %s626
              %s628 = scalar_lea.vmem %s582, %s627 [#allocation7]
              %s629 = smul.u32 8, %s626
              %s630 = scalar_lea.vmem %s593, %s629
              // While loop
              $region84: #{tpu_custom_call.1} parent=75 // loop_pre_header
                _
              $region85: #{tpu_custom_call.1} parent=75 // loop_header
                %s632 = sphi 0, %s634
                %p633 = scmp.ge.s32.totalorder %s632, %s625
                %s637 = sphi 0, %s644
                %s638 = sphi %s628, %s647
                %s639 = sphi %s630, %s648
              $region86: #{tpu_custom_call.1} parent=75 // loop_header_branch
                %636 = sbr.rel (%p633) target = $region90
              $region87: #{tpu_custom_call.1} parent=75 // loop_body
                %v640 = vld [vmem:[%s638] sm:%s602]
                %641 = vst [vmem:[%s639] sm:%s602] %v640
                %s642 = sadd.s32 1, %s637
                %p643 = scmp.ge.s32.totalorder %s642, %s625
                %s644 = scalar_select %p643, 0, %s642
                %s645 = smul.u32 %s644, 8
                %s646 = smul.u32 %s644, 8
                %s647 = scalar_lea.vmem %s628, %s645 [#allocation7]
                %s648 = scalar_lea.vmem %s630, %s646
              $region88: #{tpu_custom_call.1} parent=75 // loop_footer
                %s634 = sadd.s32 %s632, 1
              $region89: #{tpu_custom_call.1} parent=75 // loop_footer_branch
                %631 = sbr.rel target = $region85
              $region90: #{tpu_custom_call.1} parent=75 // loop_exit
                _
            $region76: #{tpu_custom_call.1} parent=67 // pred_fallthru
              _
          $region68: #{tpu_custom_call.1} parent=63 // pred_fallthru
            _
          %699 = vnop
        $region64: #{tpu_custom_call.1} parent=47 // pred_fallthru
          _
      $region48: #{tpu_custom_call.1} parent=5 // pred_fallthru
        _
      %p700 = scmp.le.s32.totalorder 2, %s19
      // Predicated region
      $region113: #{tpu_custom_call.1} parent=5 // pred_check
        %p701 = pneg %p700
      $region114: #{tpu_custom_call.1} parent=5 // pred_check_branch
        %703 = sbr.rel (%p701) target = $region116
      $region115: #{tpu_custom_call.1} parent=5 // pred_region
        %s704 = ssub.s32 %s19, 2
        // Predicated region
        $region117: #{tpu_custom_call.1} parent=115 // pred_check
          %p705 = pneg %p205
        $region118: #{tpu_custom_call.1} parent=115 // pred_check_branch
          %707 = sbr.rel (%p705) target = $region120
        $region119: #{tpu_custom_call.1} parent=115 // pred_region
          %s708 = sand.u32 %s190, 1
          %s709 = sand.u32 %s190, 1
          %s710 = smul.addr %s709, 16
          %s711 = scalar_lea.vmem [#allocation7], %s710
        $region120: #{tpu_custom_call.1} parent=115 // pred_fallthru
          _
      $region116: #{tpu_custom_call.1} parent=5 // pred_fallthru
        _
    $region6: #{tpu_custom_call.1} parent=1 // loop_footer
      %s23 = sadd.s32 1, %s19
    $region7: #{tpu_custom_call.1} parent=1 // loop_footer_branch
      %18 = sbr.rel target = $region3
    $region8: #{tpu_custom_call.1} parent=1 // loop_exit
      _
    %712 = vsyncpa [#allocation3], 1
    %s713 = scalar_lea.sflag [#allocation3], 1
    %714 = vsyncpa %s713, 1
    %715 = vsyncpa [#allocation5], 1
    %s716 = scalar_lea.sflag [#allocation5], 1
    %717 = vsyncpa %s716, 1

</llo_original>
